<compile_context>
chip_gen: v7x
topology: tpu7x:2x2x1
jax: 0.10.0
libtpu: 0.0.40
codegen_flags: <defaults>
</compile_context>

<pallas_src>
import functools

import jax
import jax.numpy as jnp
from jax import lax
from jax.experimental import pallas as pl
from jax.experimental.pallas import tpu as pltpu

LANE = 128
ACC_ROWS = 64            # (64, 128) f32 accumulator = 8 vregs -> VALU ILP
MAX_BLOCK_ROWS = 8192    # (8192, 128) f32 = 4 MiB per input block


def _round_up(x, m):
    return -(-x // m) * m


def _bce_focal_kernel(pred_ref, label_ref, out_ref, acc_ref, *,
                      gamma, w0, w1, block_rows, valid_rows):
    j = pl.program_id(0)

    @pl.when(j == 0)
    def _():
        acc_ref[...] = jnp.zeros_like(acc_ref)

    # Stream inputs in their native dtype; upcast on the VPU (free if already f32).
    p = pred_ref[...].astype(jnp.float32)
    y = label_ref[...].astype(jnp.float32)

    # Single-log BCE for hard labels {0,1}:
    #   q = probability assigned to the true class, bce = -max(log q, -100)
    # Bit-identical to torch's -(y*max(log p,-100) + (1-y)*max(log(1-p),-100))
    # when y is exactly 0 or 1 (the clamped other term is multiplied by 0).
    q = jnp.where(y > 0.5, p, 1.0 - p)
    bce = -jnp.maximum(jnp.log(q), -100.0)

    # Focal modulating factor |p - y| ** gamma, specialized for static gamma.
    t = jnp.abs(p - y)
    if gamma == 2.0:
        mod = t * t
    elif gamma == 1.0:
        mod = t
    elif gamma == 0.0:
        mod = jnp.ones_like(t)
    elif float(gamma).is_integer() and 0.0 < gamma <= 8.0:
        mod = t
        for _ in range(int(gamma) - 1):
            mod = mod * t
    else:
        mod = jnp.power(t, gamma)

    # Class-balanced alpha with compile-time constant weights: a single FMA.
    if w0 == w1:
        loss = mod * bce if w0 == 1.0 else (mod * bce) * w0
    else:
        alpha = w0 + (w1 - w0) * y
        loss = mod * bce * alpha

    # Ragged last block: rows past the array end were not DMA'd (stale VMEM),
    # so select them to 0 with a row-index mask.  Only traced when needed.
    if valid_rows is not None:
        row_ids = j * block_rows + lax.broadcasted_iota(jnp.int32, loss.shape, 0)
        loss = jnp.where(row_ids < valid_rows, loss, 0.0)

    # Partial reduction into 8 independent vreg accumulators (pure VPU adds);
    # the cross-sublane/lane work happens once, at the very last step.
    acc_ref[...] += jnp.sum(
        loss.reshape(block_rows // ACC_ROWS, ACC_ROWS, LANE), axis=0)

    @pl.when(j == pl.num_programs(0) - 1)
    def _():
        # Lane-dense (1, 128) output row; final lane reduce + /n in the wrapper.
        out_ref[...] = jnp.sum(acc_ref[...], axis=0, keepdims=True)


def bce_focal_loss(pred, label, gamma=2.0, positive_loss_weight=None):
    """Scalar BCE focal loss (mean over all elements).

    pred: probabilities in (0, 1); label: hard binary labels (0/1), any dtype.
    """
    if positive_loss_weight is not None:
        w0 = float(1.0 - positive_loss_weight)
        w1 = float(positive_loss_weight)
    else:
        # None -> both classes weight 1 (matches the PyTorch reference)
        w0 = w1 = 1.0

    n = int(pred.size)

    # Bool labels: Pallas i1 vector loads are awkward; int8 is the narrow path.
    if label.dtype == jnp.bool_:
        label = label.astype(jnp.int8)

    # Lane-dense (rows, 128) view of the flattened inputs.
    rows_exact = -(-n // LANE)
    block_rows = min(MAX_BLOCK_ROWS, _round_up(max(rows_exact, 1), ACC_ROWS))
    arr_rows = max(rows_exact, block_rows)
    need_len = arr_rows * LANE
    n_blocks = -(-arr_rows // block_rows)

    pred_f = pred.reshape(-1)
    label_f = label.reshape(-1)
    if need_len != n:
        # Pad with pred=1, label=1: bce == 0 and mod == 0 -> zero contribution,
        # so no mask stream is needed for padded lanes.  For inputs larger than
        # one block only the sub-128 tail (n % 128) is ever padded; the full
        # pad below only happens for tiny (< one block) inputs.
        pred_f = jnp.pad(pred_f, (0, need_len - n), constant_values=1)
        label_f = jnp.pad(label_f, (0, need_len - n), constant_values=1)

    pred2d = pred_f.reshape(arr_rows, LANE)
    label2d = label_f.reshape(arr_rows, LANE)

    # If the row count is not a multiple of block_rows, the last block is
    # partial and its trailing rows must be masked in-kernel.
    valid_rows = arr_rows if arr_rows % block_rows != 0 else None

    kernel = functools.partial(
        _bce_focal_kernel, gamma=float(gamma), w0=w0, w1=w1,
        block_rows=block_rows, valid_rows=valid_rows)

    # TODO(synk): on v7x a 2-way CORE_PARALLEL leading grid axis (one partial
    # row per TensorCore) would engage both cores; kept single-axis here for
    # portability across v5e/v6e/v7x.  If pred comes straight out of a sigmoid,
    # passing logits and applying sigmoid in-kernel would also save one full
    # HBM round-trip of the pred stream.
    partial_row = pl.pallas_call(
        kernel,
        out_shape=jax.ShapeDtypeStruct((1, LANE), jnp.float32),
        grid_spec=pltpu.PrefetchScalarGridSpec(
            num_scalar_prefetch=0,
            grid=(n_blocks,),
            in_specs=[
                pl.BlockSpec((block_rows, LANE), lambda j: (j, 0)),
                pl.BlockSpec((block_rows, LANE), lambda j: (j, 0)),
            ],
            out_specs=pl.BlockSpec((1, LANE), lambda j: (0, 0)),
            scratch_shapes=[pltpu.VMEM((ACC_ROWS, LANE), jnp.float32)],
        ),
        compiler_params=pltpu.CompilerParams(
            dimension_semantics=("arbitrary",),
            vmem_limit_bytes=32 * 1024 * 1024),
    )(pred2d, label2d)

    return (jnp.sum(partial_row) / jnp.float32(n)).astype(jnp.float32)


def _reference(pred, label, gamma=2.0, positive_loss_weight=None):
    """Pure-JAX torch-faithful reference (two-log BCE with -100 clamp)."""
    p = pred.astype(jnp.float32)
    y = label.astype(jnp.float32)
    bce = -(y * jnp.maximum(jnp.log(p), -100.0)
            + (1.0 - y) * jnp.maximum(jnp.log(1.0 - p), -100.0))
    mod = jnp.abs(p - y) ** gamma
    if positive_loss_weight is not None:
        w = jnp.array([1.0 - positive_loss_weight, positive_loss_weight],
                      dtype=jnp.float32)
        alpha = w[y.astype(jnp.int32)]
    else:
        alpha = 1.0
    return jnp.mean(mod * bce * alpha)


if __name__ == "__main__":
    key = jax.random.PRNGKey(0)
    k1, k2, k3, k4 = jax.random.split(key, 4)

    # NCHW-shaped inputs as produced by a sigmoid head: B=2, C=4, H=W=16
    logits = jax.random.normal(k1, (2, 4, 16, 16), dtype=jnp.float32)
    pred = jax.nn.sigmoid(logits)
    label = jax.random.bernoulli(k2, 0.3, (2, 4, 16, 16)).astype(jnp.float32)

    out = bce_focal_loss(pred, label, gamma=2.0, positive_loss_weight=0.75)
    out = jax.block_until_ready(out)
    ref = _reference(pred, label, gamma=2.0, positive_loss_weight=0.75)
    assert jnp.allclose(out, ref, rtol=1e-5, atol=1e-6), (out, ref)

    # no-class-weight path (positive_loss_weight=None)
    out2 = jax.block_until_ready(bce_focal_loss(pred, label, gamma=2.0))
    ref2 = _reference(pred, label, gamma=2.0)
    assert jnp.allclose(out2, ref2, rtol=1e-5, atol=1e-6), (out2, ref2)

    # ragged shape -> exercises the pad-with-(pred=1,label=1) tiny-input path
    logits3 = jax.random.normal(k3, (3, 5, 7), dtype=jnp.float32)
    pred3 = jax.nn.sigmoid(logits3)
    label3 = jax.random.bernoulli(k4, 0.5, (3, 5, 7)).astype(jnp.float32)
    out3 = jax.block_until_ready(
        bce_focal_loss(pred3, label3, gamma=2.0, positive_loss_weight=0.25))
    ref3 = _reference(pred3, label3, gamma=2.0, positive_loss_weight=0.25)
    assert jnp.allclose(out3, ref3, rtol=1e-5, atol=1e-6), (out3, ref3)

    # narrow-dtype label stream (int8), f32 pred, no wrapper astype copies
    out4 = jax.block_until_ready(
        bce_focal_loss(pred, label.astype(jnp.int8), gamma=2.0,
                       positive_loss_weight=0.75))
    assert jnp.allclose(out4, ref, rtol=1e-5, atol=1e-6), (out4, ref)

    print("KERNEL_OK")
</pallas_src>

<mosaic_0001>
module attributes {stable_mosaic.version = 11 : i64} {
  func.func @_bce_focal_kernel(%arg0: i32, %arg1: memref<64x128xf32, #tpu.memory_space<vmem>>, %arg2: memref<64x128xf32, #tpu.memory_space<vmem>>, %arg3: memref<1x128xf32, #tpu.memory_space<vmem>>, %arg4: memref<64x128xf32, #tpu.memory_space<vmem>>) attributes {dimension_semantics = [#tpu.dimension_semantics<arbitrary>], iteration_bounds = array<i64: 1>, scalar_prefetch = 0 : i64, scratch_operands = 1 : i64, tpu.core_type = #tpu.core_type<tc>, window_params = [{transform_indices = @transform_0, window_bounds = array<i64: 64, 128>}, {transform_indices = @transform_1, window_bounds = array<i64: 64, 128>}, {pipeline_mode = #tpu.pipeline_mode<synchronous>, transform_indices = @transform_2, window_bounds = array<i64: 1, 128>}]} {
    %c0_i32 = arith.constant 0 : i32
    %0 = arith.cmpi eq, %arg0, %c0_i32 : i32
    %1 = arith.extui %0 : i1 to i32
    %c0_i32_0 = arith.constant 0 : i32
    %2 = arith.cmpi ne, %1, %c0_i32_0 : i32
    scf.if %2 {
      %cst_16 = arith.constant 0.000000e+00 : f32
      %32 = vector.broadcast %cst_16 : f32 to vector<64x128xf32>
      %c0_17 = arith.constant 0 : index
      %c0_18 = arith.constant 0 : index
      %33 = vector.load %arg4[%c0_17, %c0_18] : memref<64x128xf32, #tpu.memory_space<vmem>>, vector<64x128xf32>
      tpu.vector_store %arg4[%c0_17, %c0_18], %32 {strides = array<i32>} : memref<64x128xf32, #tpu.memory_space<vmem>>, vector<64x128xf32>,
    } else {
    }
    %c0 = arith.constant 0 : index
    %c0_1 = arith.constant 0 : index
    %3 = vector.load %arg1[%c0, %c0_1] : memref<64x128xf32, #tpu.memory_space<vmem>>, vector<64x128xf32>
    %c0_2 = arith.constant 0 : index
    %c0_3 = arith.constant 0 : index
    %4 = vector.load %arg2[%c0_2, %c0_3] : memref<64x128xf32, #tpu.memory_space<vmem>>, vector<64x128xf32>
    %cst = arith.constant 5.000000e-01 : f32
    %5 = vector.broadcast %cst : f32 to vector<64x128xf32>
    %6 = arith.cmpf ogt, %4, %5 : vector<64x128xf32>
    %cst_4 = arith.constant 1.000000e+00 : f32
    %7 = vector.broadcast %cst_4 : f32 to vector<64x128xf32>
    %8 = arith.subf %7, %3 : vector<64x128xf32>
    %9 = arith.select %6, %3, %8 : vector<64x128xi1>, vector<64x128xf32>
    %10 = math.log %9 : vector<64x128xf32>
    %cst_5 = arith.constant -1.000000e+02 : f32
    %11 = vector.broadcast %cst_5 : f32 to vector<64x128xf32>
    %12 = arith.maximumf %10, %11 : vector<64x128xf32>
    %cst_6 = arith.constant 0.000000e+00 : f32
    %13 = vector.broadcast %cst_6 : f32 to vector<64x128xf32>
    %14 = arith.subf %13, %12 : vector<64x128xf32>
    %15 = arith.subf %3, %4 : vector<64x128xf32>
    %16 = math.absf %15 : vector<64x128xf32>
    %17 = arith.mulf %16, %16 : vector<64x128xf32>
    %cst_7 = arith.constant 5.000000e-01 : f32
    %18 = vector.broadcast %cst_7 : f32 to vector<64x128xf32>
    %19 = arith.mulf %18, %4 : vector<64x128xf32>
    %cst_8 = arith.constant 2.500000e-01 : f32
    %20 = vector.broadcast %cst_8 : f32 to vector<64x128xf32>
    %21 = arith.addf %20, %19 : vector<64x128xf32>
    %22 = arith.mulf %17, %14 : vector<64x128xf32>
    %23 = arith.mulf %22, %21 : vector<64x128xf32>
    %c0_9 = arith.constant 0 : index
    %c0_10 = arith.constant 0 : index
    %24 = vector.load %arg4[%c0_9, %c0_10] : memref<64x128xf32, #tpu.memory_space<vmem>>, vector<64x128xf32>
    %25 = vector.shape_cast %23 : vector<64x128xf32> to vector<1x64x128xf32>
    %cst_11 = arith.constant dense<0.000000e+00> : vector<64x128xf32>
    %26 = vector.multi_reduction <add>, %25, %cst_11 [0] : vector<1x64x128xf32> to vector<64x128xf32>
    %27 = arith.addf %24, %26 : vector<64x128xf32>
    %c0_12 = arith.constant 0 : index
    %c0_13 = arith.constant 0 : index
    %28 = vector.load %arg4[%c0_12, %c0_13] : memref<64x128xf32, #tpu.memory_space<vmem>>, vector<64x128xf32>
    tpu.vector_store %arg4[%c0_12, %c0_13], %27 {strides = array<i32>} : memref<64x128xf32, #tpu.memory_space<vmem>>, vector<64x128xf32>,
    %c0_i32_14 = arith.constant 0 : i32
    %29 = arith.cmpi eq, %arg0, %c0_i32_14 : i32
    %30 = arith.extui %29 : i1 to i32
    %c0_i32_15 = arith.constant 0 : i32
    %31 = arith.cmpi ne, %30, %c0_i32_15 : i32
    scf.if %31 {
      %c0_16 = arith.constant 0 : index
      %c0_17 = arith.constant 0 : index
      %32 = vector.load %arg4[%c0_16, %c0_17] : memref<64x128xf32, #tpu.memory_space<vmem>>, vector<64x128xf32>
      %cst_18 = arith.constant dense<0.000000e+00> : vector<128xf32>
      %33 = vector.multi_reduction <add>, %32, %cst_18 [0] : vector<64x128xf32> to vector<128xf32>
      %34 = vector.shape_cast %33 : vector<128xf32> to vector<1x128xf32>
      %c0_19 = arith.constant 0 : index
      %c0_20 = arith.constant 0 : index
      %35 = vector.load %arg3[%c0_19, %c0_20] : memref<1x128xf32, #tpu.memory_space<vmem>>, vector<1x128xf32>
      tpu.vector_store %arg3[%c0_19, %c0_20], %34 {strides = array<i32>} : memref<1x128xf32, #tpu.memory_space<vmem>>, vector<1x128xf32>,
    } else {
    }
    return
  }
  func.func @transform_0(%arg0: i32) -> (i32, i32) {
    %c0_i32 = arith.constant 0 : i32
    %c0_i32_0 = arith.constant 0 : i32
    return %arg0, %c0_i32 : i32, i32
  }
  func.func @transform_1(%arg0: i32) -> (i32, i32) {
    %c0_i32 = arith.constant 0 : i32
    %c0_i32_0 = arith.constant 0 : i32
    return %arg0, %c0_i32 : i32, i32
  }
  func.func @transform_2(%arg0: i32) -> (i32, i32) {
    %c0_i32 = arith.constant 0 : i32
    %c0_i32_0 = arith.constant 0 : i32
    %c0_i32_1 = arith.constant 0 : i32
    return %c0_i32, %c0_i32_0 : i32, i32
  }
}

</mosaic_0001>

<llo_original>
// kernel: tpu_custom_call.1
$region0: #{tpu_custom_call.1}
  #allocation0 [shape = 'u32[]', space=smem, size = 0x4, offset = 0x4, fixed_abs, tag = 'smem constant byte address 0x4 - core index']
  #allocation1 [shape = 'u32[144,128]{1,0:T(1,128)}', space=vmem, size = 0x12000, scoped, tag = 'internal scratch']
  #allocation2 [shape = 'f32[64,128]{1,0:T(8,128)}', space=vmem, size = 0x8000, scoped, tag = 'scratch operand']
  %s0 = inlined_call_operand.hbm [shape: f32[64,128], index: 0, kind: input, shape index: {}]
  %s1 = inlined_call_operand.hbm [shape: f32[64,128], index: 1, kind: input, shape index: {}]
  %s2 = inlined_call_operand.hbm [shape: f32[1,128], index: 2, kind: output, shape index: {}]
  %s3 = sld [smem:[#allocation0]]
  $region34: #{tpu_custom_call.1} parent=0
    _
  %s5 = ssub.s32 1, %s3
  %s6 = scalar_select 0, %s5, %s3
  $region1: #{tpu_custom_call.1} parent=0
    #allocation3 [shape = 'u8[32768]{0}', space=vmem, size = 0x8000, scoped, tag = 'input window, operand 0, single buffered']
    #allocation4 [shape = 's32[1]{0}', space=sflag, size = 0x4, scoped, tag = 'scoped memory for tpu_custom_call.1']
    #allocation5 [shape = 's32[1]{0}', space=sflag, size = 0x4, scoped, tag = 'scoped memory for tpu_custom_call.1']
    #allocation6 [shape = 'u8[32768]{0}', space=vmem, size = 0x8000, scoped, tag = 'input window, operand 1, single buffered']
    #allocation7 [shape = 's32[1]{0}', space=sflag, size = 0x4, scoped, tag = 'scoped memory for tpu_custom_call.1']
    #allocation8 [shape = 'u8[512]{0}', space=vmem, size = 0x400, scoped, tag = 'output window, operand 0, single buffered']
    %7 = vsyncpa [#allocation4], 0
    %8 = vsyncpa [#allocation7], 0
    %9 = vsyncpa [#allocation5], 0
    // Predicated region
    $region2: #{tpu_custom_call.1} parent=1 // pred_check
      _
    $region3: #{tpu_custom_call.1} parent=1 // pred_check_branch
      %11 = sbr.rel (0) target = $region5
    $region4: #{tpu_custom_call.1} parent=1 // pred_region
      %s13 = ssub.s32 1024, 1024
      %14 = vsyncadd [#allocation4], %s13
      %s15 = sshll.u32 [#allocation3], 4
      %s16 = int_to_ptr.vmem [resolvable:$true] %s15
      %21 = dma.hbm_to_vmem [thread:$0]  %s0, 1024, %s16, [#allocation4], 128, 128, 8
    $region5: #{tpu_custom_call.1} parent=1 // pred_fallthru
      _
    // Predicated region
    $region6: #{tpu_custom_call.1} parent=1 // pred_check
      _
    $region7: #{tpu_custom_call.1} parent=1 // pred_check_branch
      %23 = sbr.rel (0) target = $region9
    $region8: #{tpu_custom_call.1} parent=1 // pred_region
      %s25 = ssub.s32 1024, 1024
      %26 = vsyncadd [#allocation7], %s25
      %s27 = sshll.u32 [#allocation6], 4
      %s28 = int_to_ptr.vmem [resolvable:$true] %s27
      %33 = dma.hbm_to_vmem [thread:$0]  %s1, 1024, %s28, [#allocation7], 128, 128, 8
    $region9: #{tpu_custom_call.1} parent=1 // pred_fallthru
      _
    // Predicated region
    $region10: #{tpu_custom_call.1} parent=1 // pred_check
      _
    $region11: #{tpu_custom_call.1} parent=1 // pred_check_branch
      %35 = sbr.rel (0) target = $region13
    $region12: #{tpu_custom_call.1} parent=1 // pred_region
      %36 = dma.done [#allocation4], 1024
    $region13: #{tpu_custom_call.1} parent=1 // pred_fallthru
      _
    // Predicated region
    $region14: #{tpu_custom_call.1} parent=1 // pred_check
      _
    $region15: #{tpu_custom_call.1} parent=1 // pred_check_branch
      %38 = sbr.rel (0) target = $region17
    $region16: #{tpu_custom_call.1} parent=1 // pred_region
      %39 = dma.done [#allocation7], 1024
    $region17: #{tpu_custom_call.1} parent=1 // pred_fallthru
      _
    %p40 = scmp.eq.s32.totalorder 0, 0
    // Predicated region
    $region18: #{tpu_custom_call.1} parent=1 // pred_check
      %p41 = pneg %p40
    $region19: #{tpu_custom_call.1} parent=1 // pred_check_branch
      %43 = sbr.rel (%p41) target = $region21
    $region20: #{tpu_custom_call.1} parent=1 // pred_region
      %44 = vst [vmem:[#allocation2] sm:$0xff] 0.0
      %45 = vst [vmem:[#allocation2 + $0x8] sm:$0xff] 0.0
      %46 = vst [vmem:[#allocation2 + $0x10] sm:$0xff] 0.0
      %47 = vst [vmem:[#allocation2 + $0x18] sm:$0xff] 0.0
      %48 = vst [vmem:[#allocation2 + $0x20] sm:$0xff] 0.0
      %49 = vst [vmem:[#allocation2 + $0x28] sm:$0xff] 0.0
      %50 = vst [vmem:[#allocation2 + $0x30] sm:$0xff] 0.0
      %51 = vst [vmem:[#allocation2 + $0x38] sm:$0xff] 0.0
    $region21: #{tpu_custom_call.1} parent=1 // pred_fallthru
      _
    %v52 = vld [vmem:[#allocation3] sm:$0xff]
    %v53 = vld [vmem:[#allocation3 + $0x8] sm:$0xff]
    %v54 = vld [vmem:[#allocation3 + $0x10] sm:$0xff]
    %v55 = vld [vmem:[#allocation3 + $0x18] sm:$0xff]
    %v56 = vld [vmem:[#allocation3 + $0x20] sm:$0xff]
    %v57 = vld [vmem:[#allocation3 + $0x28] sm:$0xff]
    %v58 = vld [vmem:[#allocation3 + $0x30] sm:$0xff]
    %v59 = vld [vmem:[#allocation3 + $0x38] sm:$0xff]
    %v60 = vld [vmem:[#allocation6] sm:$0xff]
    %v61 = vld [vmem:[#allocation6 + $0x8] sm:$0xff]
    %v62 = vld [vmem:[#allocation6 + $0x10] sm:$0xff]
    %v63 = vld [vmem:[#allocation6 + $0x18] sm:$0xff]
    %v64 = vld [vmem:[#allocation6 + $0x20] sm:$0xff]
    %v65 = vld [vmem:[#allocation6 + $0x28] sm:$0xff]
    %v66 = vld [vmem:[#allocation6 + $0x30] sm:$0xff]
    %v67 = vld [vmem:[#allocation6 + $0x38] sm:$0xff]
    %vm68 = vcmp.gt.f32.partialorder %v60, 0.5
    %vm69 = vcmp.gt.f32.partialorder %v61, 0.5
    %vm70 = vcmp.gt.f32.partialorder %v62, 0.5
    %vm71 = vcmp.gt.f32.partialorder %v63, 0.5
    %vm72 = vcmp.gt.f32.partialorder %v64, 0.5
    %vm73 = vcmp.gt.f32.partialorder %v65, 0.5
    %vm74 = vcmp.gt.f32.partialorder %v66, 0.5
    %vm75 = vcmp.gt.f32.partialorder %v67, 0.5
    %v76 = vsub.f32 1.0, %v52
    %v77 = vsub.f32 1.0, %v53
    %v78 = vsub.f32 1.0, %v54
    %v79 = vsub.f32 1.0, %v55
    %v80 = vsub.f32 1.0, %v56
    %v81 = vsub.f32 1.0, %v57
    %v82 = vsub.f32 1.0, %v58
    %v83 = vsub.f32 1.0, %v59
    %v84 = vsel %vm68, %v52, %v76
    %v85 = vsel %vm69, %v53, %v77
    %v86 = vsel %vm70, %v54, %v78
    %v87 = vsel %vm71, %v55, %v79
    %v88 = vsel %vm72, %v56, %v80
    %v89 = vsel %vm73, %v57, %v81
    %v90 = vsel %vm74, %v58, %v82
    %v91 = vsel %vm75, %v59, %v83
    %v92 = vlog2.pop %v84
    %v93 = vmul.f32 %v92, 0.6931472
    %v94 = vlog2.pop %v85
    %v95 = vmul.f32 %v94, 0.6931472
    %v96 = vlog2.pop %v86
    %v97 = vmul.f32 %v96, 0.6931472
    %v98 = vlog2.pop %v87
    %v99 = vmul.f32 %v98, 0.6931472
    %v100 = vlog2.pop %v88
    %v101 = vmul.f32 %v100, 0.6931472
    %v102 = vlog2.pop %v89
    %v103 = vmul.f32 %v102, 0.6931472
    %v104 = vlog2.pop %v90
    %v105 = vmul.f32 %v104, 0.6931472
    %v106 = vlog2.pop %v91
    %v107 = vmul.f32 %v106, 0.6931472
    %v108 = vmax.f32 %v93, -100.0
    %v109 = vmax.f32 %v95, -100.0
    %v110 = vmax.f32 %v97, -100.0
    %v111 = vmax.f32 %v99, -100.0
    %v112 = vmax.f32 %v101, -100.0
    %v113 = vmax.f32 %v103, -100.0
    %v114 = vmax.f32 %v105, -100.0
    %v115 = vmax.f32 %v107, -100.0
    %v116 = vsub.f32 0.0, %v108
    %v117 = vsub.f32 0.0, %v109
    %v118 = vsub.f32 0.0, %v110
    %v119 = vsub.f32 0.0, %v111
    %v120 = vsub.f32 0.0, %v112
    %v121 = vsub.f32 0.0, %v113
    %v122 = vsub.f32 0.0, %v114
    %v123 = vsub.f32 0.0, %v115
    %v124 = vsub.f32 %v52, %v60
    %v125 = vsub.f32 %v53, %v61
    %v126 = vsub.f32 %v54, %v62
    %v127 = vsub.f32 %v55, %v63
    %v128 = vsub.f32 %v56, %v64
    %v129 = vsub.f32 %v57, %v65
    %v130 = vsub.f32 %v58, %v66
    %v131 = vsub.f32 %v59, %v67
    %v132 = vand.u32 2147483647, %v124
    %v133 = vand.u32 2147483647, %v125
    %v134 = vand.u32 2147483647, %v126
    %v135 = vand.u32 2147483647, %v127
    %v136 = vand.u32 2147483647, %v128
    %v137 = vand.u32 2147483647, %v129
    %v138 = vand.u32 2147483647, %v130
    %v139 = vand.u32 2147483647, %v131
    %v140 = vmul.f32 %v132, %v132
    %v141 = vmul.f32 %v133, %v133
    %v142 = vmul.f32 %v134, %v134
    %v143 = vmul.f32 %v135, %v135
    %v144 = vmul.f32 %v136, %v136
    %v145 = vmul.f32 %v137, %v137
    %v146 = vmul.f32 %v138, %v138
    %v147 = vmul.f32 %v139, %v139
    %v148 = vmul.f32 %v60, 0.5
    %v149 = vmul.f32 %v61, 0.5
    %v150 = vmul.f32 %v62, 0.5
    %v151 = vmul.f32 %v63, 0.5
    %v152 = vmul.f32 %v64, 0.5
    %v153 = vmul.f32 %v65, 0.5
    %v154 = vmul.f32 %v66, 0.5
    %v155 = vmul.f32 %v67, 0.5
    %v156 = vadd.f32 %v148, 0.25
    %v157 = vadd.f32 %v149, 0.25
    %v158 = vadd.f32 %v150, 0.25
    %v159 = vadd.f32 %v151, 0.25
    %v160 = vadd.f32 %v152, 0.25
    %v161 = vadd.f32 %v153, 0.25
    %v162 = vadd.f32 %v154, 0.25
    %v163 = vadd.f32 %v155, 0.25
    %v164 = vmul.f32 %v140, %v116
    %v165 = vmul.f32 %v141, %v117
    %v166 = vmul.f32 %v142, %v118
    %v167 = vmul.f32 %v143, %v119
    %v168 = vmul.f32 %v144, %v120
    %v169 = vmul.f32 %v145, %v121
    %v170 = vmul.f32 %v146, %v122
    %v171 = vmul.f32 %v147, %v123
    %v172 = vmul.f32 %v164, %v156
    %v173 = vmul.f32 %v165, %v157
    %v174 = vmul.f32 %v166, %v158
    %v175 = vmul.f32 %v167, %v159
    %v176 = vmul.f32 %v168, %v160
    %v177 = vmul.f32 %v169, %v161
    %v178 = vmul.f32 %v170, %v162
    %v179 = vmul.f32 %v171, %v163
    %v180 = vld [vmem:[#allocation2] sm:$0xff]
    %v181 = vld [vmem:[#allocation2 + $0x8] sm:$0xff]
    %v182 = vld [vmem:[#allocation2 + $0x10] sm:$0xff]
    %v183 = vld [vmem:[#allocation2 + $0x18] sm:$0xff]
    %v184 = vld [vmem:[#allocation2 + $0x20] sm:$0xff]
    %v185 = vld [vmem:[#allocation2 + $0x28] sm:$0xff]
    %v186 = vld [vmem:[#allocation2 + $0x30] sm:$0xff]
    %v187 = vld [vmem:[#allocation2 + $0x38] sm:$0xff]
    %v188 = vadd.f32 %v172, 0.0
    %v189 = vadd.f32 %v173, 0.0
    %v190 = vadd.f32 %v174, 0.0
    %v191 = vadd.f32 %v175, 0.0
    %v192 = vadd.f32 %v176, 0.0
    %v193 = vadd.f32 %v177, 0.0
    %v194 = vadd.f32 %v178, 0.0
    %v195 = vadd.f32 %v179, 0.0
    %v196 = vadd.f32 %v180, %v188
    %v197 = vadd.f32 %v181, %v189
    %v198 = vadd.f32 %v182, %v190
    %v199 = vadd.f32 %v183, %v191
    %v200 = vadd.f32 %v184, %v192
    %v201 = vadd.f32 %v185, %v193
    %v202 = vadd.f32 %v186, %v194
    %v203 = vadd.f32 %v187, %v195
    %204 = vst [vmem:[#allocation2] sm:$0xff] %v196
    %205 = vst [vmem:[#allocation2 + $0x8] sm:$0xff] %v197
    %206 = vst [vmem:[#allocation2 + $0x10] sm:$0xff] %v198
    %207 = vst [vmem:[#allocation2 + $0x18] sm:$0xff] %v199
    %208 = vst [vmem:[#allocation2 + $0x20] sm:$0xff] %v200
    %209 = vst [vmem:[#allocation2 + $0x28] sm:$0xff] %v201
    %210 = vst [vmem:[#allocation2 + $0x30] sm:$0xff] %v202
    %211 = vst [vmem:[#allocation2 + $0x38] sm:$0xff] %v203
    // Predicated region
    $region22: #{tpu_custom_call.1} parent=1 // pred_check
      %p212 = pneg %p40
    $region23: #{tpu_custom_call.1} parent=1 // pred_check_branch
      %214 = sbr.rel (%p212) target = $region25
    $region24: #{tpu_custom_call.1} parent=1 // pred_region
      %v215 = vld [vmem:[#allocation2] sm:$0xff]
      %v216 = vld [vmem:[#allocation2 + $0x8] sm:$0xff]
      %v217 = vld [vmem:[#allocation2 + $0x10] sm:$0xff]
      %v218 = vld [vmem:[#allocation2 + $0x18] sm:$0xff]
      %v219 = vld [vmem:[#allocation2 + $0x20] sm:$0xff]
      %v220 = vld [vmem:[#allocation2 + $0x28] sm:$0xff]
      %v221 = vld [vmem:[#allocation2 + $0x30] sm:$0xff]
      %v222 = vld [vmem:[#allocation2 + $0x38] sm:$0xff]
      %v223 = vadd.f32 %v215, %v216
      %v224 = vadd.f32 %v223, %v217
      %v225 = vadd.f32 %v224, %v218
      %v226 = vadd.f32 %v225, %v219
      %v227 = vadd.f32 %v226, %v220
      %v228 = vadd.f32 %v227, %v221
      %v229 = vadd.f32 %v228, %v222
      %v230 = vrot.slane %v229, 4
      %v231 = vadd.f32 %v229, %v230
      %v232 = vrot.slane %v231, 2
      %v233 = vadd.f32 %v231, %v232
      %v234 = vrot.slane %v233, 1
      %v235 = vadd.f32 %v233, %v234
      %236 = vst [vmem:[#allocation8] sm:$0x1] %v235
    $region25: #{tpu_custom_call.1} parent=1 // pred_fallthru
      _
    // Predicated region
    $region26: #{tpu_custom_call.1} parent=1 // pred_check
      _
    $region27: #{tpu_custom_call.1} parent=1 // pred_check_branch
      %238 = sbr.rel (0) target = $region29
    $region28: #{tpu_custom_call.1} parent=1 // pred_region
      %s240 = ssub.s32 16, 16
      %241 = vsyncadd [#allocation5], %s240
      %s243 = sshll.u32 [#allocation8], 4
      %s244 = int_to_ptr.vmem [resolvable:$true] %s243
      %246 = dma.vmem_to_hbm [thread:$0]  %s244, 16, %s2, [#allocation5]
    $region29: #{tpu_custom_call.1} parent=1 // pred_fallthru
      _
    // Predicated region
    $region30: #{tpu_custom_call.1} parent=1 // pred_check
      _
    $region31: #{tpu_custom_call.1} parent=1 // pred_check_branch
      %248 = sbr.rel (0) target = $region33
    $region32: #{tpu_custom_call.1} parent=1 // pred_region
      %249 = dma.done [#allocation5], 16
    $region33: #{tpu_custom_call.1} parent=1 // pred_fallthru
      _
    %250 = vsyncpa [#allocation4], 1
    %251 = vsyncpa [#allocation7], 1
    %252 = vsyncpa [#allocation5], 1

</llo_original>
